<compile_context>
chip_gen: v7x
topology: tpu7x:2x2x1
jax: 0.10.0
libtpu: 0.0.40
codegen_flags: <defaults>
</compile_context>

<pallas_src>
import functools

import jax
import jax.numpy as jnp
from jax.experimental import pallas as pl
from jax.experimental.pallas import tpu as pltpu


# --------------------------------------------------------------------------
# Transposed-conv tap bookkeeping
# --------------------------------------------------------------------------
# ConvTranspose2d(k=4, s=2, p=1): output row oh = 2*m + r receives input row
# m + di through kernel row kh, for (di, kh) in _TAPS[r] (same along W).
_TAPS = {0: ((0, 1), (-1, 3)), 1: ((0, 2), (1, 0))}

# Sublane-aligned column offset of the interior inside the padded scratch
# (16 = bf16 sublane packing).
_BASE = 16


def _tap_offsets(r):
    """(di, dj) input-plane offsets for output row-parity r, in the order the
    per-tap weights are stacked: di from _TAPS[r], dj in (-1, 0, +1)."""
    return [(di, dj) for (di, _) in _TAPS[r] for dj in (-1, 0, 1)]


def _is_multi_tensorcore():
    """Best effort: v7x has 2 TensorCores per chip (needs 'parallel' grid +
    per-step scratch-border refresh); v5e/v6e are single-TC."""
    try:
        kind = jax.devices()[0].device_kind.lower()
    except Exception:
        return False
    return ("v7" in kind) or ("7x" in kind)


# --------------------------------------------------------------------------
# Parameter setup helpers (plain JAX glue)
# --------------------------------------------------------------------------
def _spectral_normalize(w2d, iters=30):
    """Mirror torch.nn.utils.spectral_norm: divide by the top singular value."""
    u = jnp.ones((w2d.shape[0],), w2d.dtype)
    v = jnp.ones((w2d.shape[1],), w2d.dtype)
    for _ in range(iters):
        v = w2d.T @ u
        v = v / (jnp.linalg.norm(v) + 1e-12)
        u = w2d @ v
        u = u / (jnp.linalg.norm(u) + 1e-12)
    sigma = u @ (w2d @ v)
    return w2d / sigma


def init_generator_params(key, img_channels, latent_dim, layer_list):
    init_size = 64 // 2 ** len(layer_list)
    n_layers = len(layer_list)
    keys = iter(jax.random.split(key, 2 + 6 * n_layers))

    c0 = layer_list[0]
    out_f = c0 * init_size ** 2
    fc_w = jax.random.normal(next(keys), (out_f, latent_dim), jnp.float32) * 0.05
    fc_w = _spectral_normalize(fc_w)                      # torch layout (out, in)
    fc_b = jax.random.normal(next(keys), (out_f,), jnp.float32) * 0.01

    # Column permutation turning torch's (c, h, w) flat ordering into NHWC
    # (h, w, c) so the fc kernel output reshapes straight to (N, s, s, c0).
    perm = jnp.arange(out_f).reshape(c0, init_size, init_size)
    perm = jnp.transpose(perm, (1, 2, 0)).reshape(-1)

    params = {
        "fc_w": fc_w.T[:, perm].astype(jnp.bfloat16),     # (latent, out_f), NHWC cols
        "fc_b": fc_b[perm].reshape(1, -1),
        "fc_w_ref": fc_w.T,                               # (latent, out_f), torch cols
        "fc_b_ref": fc_b.reshape(1, -1),
        "init_size": init_size,
        "layer_list": list(layer_list),
        "blocks": [],
    }

    chans = list(layer_list) + [img_channels]
    for i in range(n_layers):
        c_in, c_out = chans[i], chans[i + 1]
        gamma = 1.0 + 0.1 * jax.random.normal(next(keys), (c_in,), jnp.float32)
        beta = 0.1 * jax.random.normal(next(keys), (c_in,), jnp.float32)
        rmean = 0.1 * jax.random.normal(next(keys), (c_in,), jnp.float32)
        rvar = jnp.abs(1.0 + 0.1 * jax.random.normal(next(keys), (c_in,), jnp.float32))
        scale = gamma / jnp.sqrt(rvar + 1e-5)
        shift = beta - rmean * scale

        w = jax.random.normal(next(keys), (c_in, c_out, 4, 4), jnp.float32) * 0.1
        w = _spectral_normalize(w.reshape(c_in, -1)).reshape(c_in, c_out, 4, 4)

        is_final = i == n_layers - 1
        if is_final:
            bias = 0.01 * jax.random.normal(next(keys), (c_out,), jnp.float32)
        else:
            _ = next(keys)
            bias = jnp.zeros((c_out,), jnp.float32)       # ConvTranspose2d(bias=False)

        # Per-tap, s-parity-fused weights: w_taps[r, t] is (C_in, 2*C_out); the
        # s=0 columns carry the kernel tap for dj in {0,-1} (zero otherwise),
        # the s=1 columns carry the tap for dj in {0,+1}.
        w_k = jnp.transpose(w, (2, 3, 0, 1))              # (kh, kw, Cin, Cout)
        kw_of = {s: dict(_TAPS[s]) for s in (0, 1)}       # s -> {dj: kw}
        zero_half = jnp.zeros((c_in, c_out), jnp.float32)
        w_taps = []
        for r in (0, 1):
            kh_of = dict(_TAPS[r])                        # di -> kh
            taps_r = []
            for (di, dj) in _tap_offsets(r):
                kh = kh_of[di]
                halves = [w_k[kh, kw_of[s][dj]] if dj in kw_of[s] else zero_half
                          for s in (0, 1)]
                taps_r.append(jnp.concatenate(halves, axis=1))   # (Cin, 2*Cout)
            w_taps.append(jnp.stack(taps_r, axis=0))
        w_taps = jnp.stack(w_taps, axis=0)                # (2, 6, Cin, 2*Cout)

        params["blocks"].append(dict(
            w_torch=w,                                    # (Cin, Cout, 4, 4) for reference
            w_taps=w_taps.astype(jnp.bfloat16),
            scale=scale.reshape(1, -1),
            shift=shift.reshape(1, -1),
            bias=bias,
            bias2=jnp.concatenate([bias, bias]).reshape(1, -1),  # column = s*C_out + c
            sigmoid=is_final,
        ))
    return params


# --------------------------------------------------------------------------
# Pallas kernels
# --------------------------------------------------------------------------
def fc_kernel(x_ref, noise_ref, w_ref, b_ref, out_ref):
    # x += 0.1 * noise ; bf16 matmul with f32 accumulation ; + b
    x = (x_ref[...] + noise_ref[...] * 0.1).astype(jnp.bfloat16)
    acc = jnp.dot(x, w_ref[...], preferred_element_type=jnp.float32)
    out_ref[...] = (acc + b_ref[...]).astype(out_ref.dtype)


def fc_forward(x, noise, w, b):
    # Tiny (<1% of FLOPs): left as a single whole-array VMEM kernel on purpose.
    n = x.shape[0]
    out_f = w.shape[1]
    vmem = pltpu.MemorySpace.VMEM
    return pl.pallas_call(
        fc_kernel,
        out_shape=jax.ShapeDtypeStruct((n, out_f), jnp.float32),
        in_specs=[pl.BlockSpec(memory_space=vmem) for _ in range(4)],
        out_specs=pl.BlockSpec(memory_space=vmem),
    )(x, noise, w, b)


def deconv_block_kernel(x_ref, w_ref, scale_ref, shift_ref, bias_ref,
                        out_ref, pad_ref, *, apply_sigmoid,
                        refresh_border_every_step):
    bt, H, W, C_in = x_ref.shape
    C_out2 = bias_ref.shape[-1]                # = 2 * C_out (s-parity fused columns)
    M = bt * H * W
    pdt = pad_ref.dtype                        # bf16 scratch / matmul operands

    # Fused inference BatchNorm + ReLU (f32 math), then bf16 for the MXU.
    y = jnp.maximum(
        x_ref[...].astype(jnp.float32) * scale_ref[...].reshape(1, 1, 1, C_in)
        + shift_ref[...].reshape(1, 1, 1, C_in), 0.0).astype(pdt)

    def zero_border():
        zrow = jnp.zeros((bt, 1, W + 2, C_in), pdt)
        zcol = jnp.zeros((bt, H, 1, C_in), pdt)
        pad_ref[:, pl.ds(0, 1), pl.ds(_BASE - 1, W + 2), :] = zrow
        pad_ref[:, pl.ds(H + 1, 1), pl.ds(_BASE - 1, W + 2), :] = zrow
        pad_ref[:, pl.ds(1, H), pl.ds(_BASE - 1, 1), :] = zcol
        pad_ref[:, pl.ds(1, H), pl.ds(_BASE + W, 1), :] = zcol

    if refresh_border_every_step:
        # Grid may be split across TensorCores (each with its own scratch).
        zero_border()
    else:
        # Single-TC sequential grid: the border survives across grid steps.
        @pl.when(pl.program_id(0) == 0)
        def _():
            zero_border()

    # Interior is fully overwritten every step at a sublane-aligned offset.
    pad_ref[:, pl.ds(1, H), pl.ds(_BASE, W), :] = y

    # The 9 distinct shifted planes, loaded once and reused by both r parities.
    # NOTE: scratch columns outside [_BASE-1, _BASE+W] are never initialized;
    # with dj in {-1,0,+1} they are also never read -- keep in sync if _BASE or
    # the tap set changes.
    planes = {}
    for di in (-1, 0, 1):
        for dj in (-1, 0, 1):
            p = pad_ref[:, pl.ds(1 + di, H), pl.ds(_BASE + dj, W), :]
            planes[(di, dj)] = p.reshape(M, C_in)

    # Per row-parity r: 6 accumulate-dots (K = C_in, N = 2*C_out) -- no lane
    # concatenation of planes, and the result columns are already (s, c)
    # interleaved.  The (w, s, c) lane-dense row is then assembled with
    # minor-dim concats and stored as ONE dense write per grid step.
    rows = []
    for r in (0, 1):
        acc = None
        for t, (di, dj) in enumerate(_tap_offsets(r)):
            d = jnp.dot(planes[(di, dj)], w_ref[r, t],
                        preferred_element_type=jnp.float32)
            acc = d if acc is None else acc + d
        res = acc + bias_ref[...]
        if apply_sigmoid:
            res = jax.nn.sigmoid(res)
        res = res.reshape(bt, H, W, C_out2).astype(out_ref.dtype)
        rows.append(jnp.concatenate([res[:, :, w, :] for w in range(W)], axis=-1))
    out_ref[...] = jnp.concatenate(rows, axis=-1)          # (bt, H, 2*W*C_out2)


def _pick_block_batch(n, H, W, multi_tc):
    """Pack batch elements so the matmul M dim reaches ~256 rows; reserve >= 2
    grid steps only on multi-TensorCore chips."""
    hw = H * W
    bt = max(1, min(n, 256 // max(hw, 1)))
    if multi_tc and n >= 2:
        bt = min(bt, max(1, n // 2))
    while n % bt:
        bt -= 1
    return bt


def deconv_block(x, w_taps, scale, shift, bias2, *, apply_sigmoid, out_dtype,
                 multi_tc):
    # x: (N, H, W, C_in) NHWC (f32 or bf16) ; w_taps: (2, 6, C_in, 2*C_out) bf16
    n, H, W, C_in = x.shape
    C_out2 = bias2.shape[-1]
    C_out = C_out2 // 2
    flat = 2 * W * C_out2                                  # (r, w, s, c) flattened
    bt = _pick_block_batch(n, H, W, multi_tc)
    kernel = functools.partial(deconv_block_kernel,
                               apply_sigmoid=apply_sigmoid,
                               refresh_border_every_step=multi_tc)
    out = pl.pallas_call(
        kernel,
        out_shape=jax.ShapeDtypeStruct((n, H, flat), out_dtype),
        grid_spec=pltpu.PrefetchScalarGridSpec(
            num_scalar_prefetch=0,
            grid=(n // bt,),
            in_specs=[
                pl.BlockSpec((bt, H, W, C_in), lambda i: (i, 0, 0, 0)),
                pl.BlockSpec((2, 6, C_in, C_out2), lambda i: (0, 0, 0, 0)),
                pl.BlockSpec((1, C_in), lambda i: (0, 0)),
                pl.BlockSpec((1, C_in), lambda i: (0, 0)),
                pl.BlockSpec((1, C_out2), lambda i: (0, 0)),
            ],
            out_specs=pl.BlockSpec((bt, H, flat), lambda i: (i, 0, 0)),
            scratch_shapes=[pltpu.VMEM((bt, H + 2, W + 2 * _BASE, C_in),
                                       jnp.bfloat16)],
        ),
        compiler_params=pltpu.CompilerParams(
            dimension_semantics=(("parallel",) if multi_tc else ("arbitrary",))),
    )(x, w_taps, scale, shift, bias2)
    # out[n, h, r*W*2C + w*2C + s*C + c] == y[n, 2h+r, 2w+s, c]: the stride-2
    # parity interleave is a pure (free) row-major reshape.
    return out.reshape(n, 2 * H, 2 * W, C_out)


# --------------------------------------------------------------------------
# Generator forward (Pallas) and pure-JAX reference
# --------------------------------------------------------------------------
def generator_forward(params, x, noise):
    multi_tc = _is_multi_tensorcore()
    h = fc_forward(x, noise, params["fc_w"], params["fc_b"])
    n = x.shape[0]
    c0 = params["layer_list"][0]
    s = params["init_size"]
    h = h.reshape(n, s, s, c0)                 # fc columns already NHWC-ordered
    n_blocks = len(params["blocks"])
    for i, blk in enumerate(params["blocks"]):
        is_final = i == n_blocks - 1
        h = deconv_block(h, blk["w_taps"], blk["scale"], blk["shift"], blk["bias2"],
                         apply_sigmoid=blk["sigmoid"],
                         out_dtype=jnp.float32 if is_final else jnp.bfloat16,
                         multi_tc=multi_tc)
    return jnp.transpose(h, (0, 3, 1, 2))      # -> NCHW like PyTorch (C==1: ~free)


def generator_reference(params, x, noise):
    """Pure-JAX reference (lax.conv), with bf16 rounding applied at the same
    points as the kernel path (matmul operands + inter-block activations)."""
    xb = (x + 0.1 * noise).astype(jnp.bfloat16)
    h = jnp.dot(xb, params["fc_w_ref"].astype(jnp.bfloat16),
                preferred_element_type=jnp.float32) + params["fc_b_ref"]
    n = x.shape[0]
    c0 = params["layer_list"][0]
    s = params["init_size"]
    h = h.reshape(n, c0, s, s)
    for blk in params["blocks"]:
        c_in = blk["w_torch"].shape[0]
        h = jnp.maximum(h * blk["scale"].reshape(1, c_in, 1, 1)
                        + blk["shift"].reshape(1, c_in, 1, 1), 0.0)
        wr = jnp.flip(jnp.transpose(blk["w_torch"], (1, 0, 2, 3)), axis=(2, 3))
        h = jax.lax.conv_general_dilated(
            h.astype(jnp.bfloat16), wr.astype(jnp.bfloat16),
            window_strides=(1, 1), padding=((2, 2), (2, 2)),
            lhs_dilation=(2, 2), rhs_dilation=(1, 1),
            dimension_numbers=("NCHW", "OIHW", "NCHW"),
            preferred_element_type=jnp.float32)
        h = h + blk["bias"].reshape(1, -1, 1, 1)
        if blk["sigmoid"]:
            h = jax.nn.sigmoid(h)
        else:
            h = h.astype(jnp.bfloat16).astype(jnp.float32)   # bf16 activations
    return h


if __name__ == "__main__":
    import numpy as np

    latent_dim = 32
    layer_list = [32, 16, 8]      # small version of the module's [256, 128, 64]
    img_channels = 1
    batch = 4

    key = jax.random.PRNGKey(0)
    k_params, k_x, k_noise = jax.random.split(key, 3)
    params = init_generator_params(k_params, img_channels, latent_dim, layer_list)

    x = jax.random.normal(k_x, (batch, latent_dim), jnp.float32)
    noise = jax.random.normal(k_noise, (batch, latent_dim), jnp.float32)

    out = jax.block_until_ready(generator_forward(params, x, noise))
    assert out.shape == (batch, img_channels, 64, 64), out.shape

    ref = jax.block_until_ready(generator_reference(params, x, noise))
    np.testing.assert_allclose(np.asarray(out), np.asarray(ref),
                               atol=1e-2, rtol=1e-2)
    print("KERNEL_OK")
</pallas_src>

<mosaic_0001>
module attributes {stable_mosaic.version = 11 : i64} {
  func.func @fc_kernel(%arg0: memref<4x32xf32, #tpu.memory_space<vmem>>, %arg1: memref<4x32xf32, #tpu.memory_space<vmem>>, %arg2: memref<32x2048xbf16, #tpu.memory_space<vmem>>, %arg3: memref<1x2048xf32, #tpu.memory_space<vmem>>, %arg4: memref<4x2048xf32, #tpu.memory_space<vmem>>) attributes {dimension_semantics = [], scalar_prefetch = 0 : i64, scratch_operands = 0 : i64, tpu.core_type = #tpu.core_type<tc>} {
    %c0 = arith.constant 0 : index
    %c0_0 = arith.constant 0 : index
    %0 = vector.load %arg0[%c0, %c0_0] : memref<4x32xf32, #tpu.memory_space<vmem>>, vector<4x32xf32>
    %c0_1 = arith.constant 0 : index
    %c0_2 = arith.constant 0 : index
    %1 = vector.load %arg1[%c0_1, %c0_2] : memref<4x32xf32, #tpu.memory_space<vmem>>, vector<4x32xf32>
    %cst = arith.constant 1.000000e-01 : f32
    %2 = vector.broadcast %cst : f32 to vector<4x32xf32>
    %3 = arith.mulf %1, %2 : vector<4x32xf32>
    %4 = arith.addf %0, %3 : vector<4x32xf32>
    %5 = arith.truncf %4 : vector<4x32xf32> to vector<4x32xbf16>
    %c0_3 = arith.constant 0 : index
    %c0_4 = arith.constant 0 : index
    %6 = vector.load %arg2[%c0_3, %c0_4] : memref<32x2048xbf16, #tpu.memory_space<vmem>>, vector<32x2048xbf16>
    %cst_5 = arith.constant dense<0.000000e+00> : vector<4x2048xf32>
    %7 = tpu.matmul %5, %6, %cst_5 {dimension_numbers = #tpu.dot_dimension_numbers<[1], [0], [0], [1], [0, 0, 1, 1], [], []>} : vector<4x32xbf16>, vector<32x2048xbf16>, vector<4x2048xf32> -> vector<4x2048xf32>
    %c0_6 = arith.constant 0 : index
    %c0_7 = arith.constant 0 : index
    %8 = vector.load %arg3[%c0_6, %c0_7] : memref<1x2048xf32, #tpu.memory_space<vmem>>, vector<1x2048xf32>
    %9 = vector.broadcast %8 : vector<1x2048xf32> to vector<4x2048xf32>
    %10 = arith.addf %7, %9 : vector<4x2048xf32>
    %c0_8 = arith.constant 0 : index
    %c0_9 = arith.constant 0 : index
    %11 = vector.load %arg4[%c0_8, %c0_9] : memref<4x2048xf32, #tpu.memory_space<vmem>>, vector<4x2048xf32>
    tpu.vector_store %arg4[%c0_8, %c0_9], %10 {strides = array<i32>} : memref<4x2048xf32, #tpu.memory_space<vmem>>, vector<4x2048xf32>,
    return
  }
}

</mosaic_0001>

<llo_original>
// kernel: tpu_custom_call.1
$region0: #{tpu_custom_call.1}
  #allocation0 [shape = 'u32[]', space=smem, size = 0x4, offset = 0x4, fixed_abs, tag = 'smem constant byte address 0x4 - core index']
  #allocation1 [shape = 'u32[144,128]{1,0:T(1,128)}', space=vmem, size = 0x12000, scoped, tag = 'internal scratch']
  %s0 = inlined_call_operand.hbm [shape: f32[4,32], index: 0, kind: input, shape index: {}]
  %s1 = inlined_call_operand.hbm [shape: f32[4,32], index: 1, kind: input, shape index: {}]
  %s2 = inlined_call_operand.hbm [shape: bf16[32,2048], index: 2, kind: input, shape index: {}]
  %s3 = inlined_call_operand.hbm [shape: f32[1,2048], index: 3, kind: input, shape index: {}]
  %s4 = inlined_call_operand.hbm [shape: f32[4,2048], index: 4, kind: output, shape index: {}]
  %s5 = sld [smem:[#allocation0]]
  $region42: #{tpu_custom_call.1} parent=0
    _
  %s7 = ssub.s32 1, %s5
  %s8 = scalar_select 0, %s7, %s5
  $region1: #{tpu_custom_call.1} parent=0
    #allocation2 [shape = 'u8[2048]{0}', space=vmem, size = 0x800, scoped, tag = 'input window, operand 0, single buffered']
    #allocation3 [shape = 's32[1]{0}', space=sflag, size = 0x4, scoped, tag = 'scoped memory for tpu_custom_call.1']
    #allocation4 [shape = 's32[1]{0}', space=sflag, size = 0x4, scoped, tag = 'scoped memory for tpu_custom_call.1']
    #allocation5 [shape = 'u8[2048]{0}', space=vmem, size = 0x800, scoped, tag = 'input window, operand 1, single buffered']
    #allocation6 [shape = 's32[1]{0}', space=sflag, size = 0x4, scoped, tag = 'scoped memory for tpu_custom_call.1']
    #allocation7 [shape = 'u8[131072]{0}', space=vmem, size = 0x20000, scoped, tag = 'input window, operand 2, single buffered']
    #allocation8 [shape = 'u8[8192]{0}', space=vmem, size = 0x2000, scoped, tag = 'input window, operand 3, single buffered']
    #allocation9 [shape = 's32[1]{0}', space=sflag, size = 0x4, scoped, tag = 'scoped memory for tpu_custom_call.1']
    #allocation10 [shape = 'u8[32768]{0}', space=vmem, size = 0x8000, scoped, tag = 'output window, operand 0, single buffered']
    %9 = vsyncpa [#allocation3], 0
    %10 = vsyncpa [#allocation6], 0
    %11 = vsyncpa [#allocation9], 0
    %12 = vsyncpa [#allocation4], 0
    // Predicated region
    $region2: #{tpu_custom_call.1} parent=1 // pred_check
      _
    $region3: #{tpu_custom_call.1} parent=1 // pred_check_branch
      %14 = sbr.rel (0) target = $region5
    $region4: #{tpu_custom_call.1} parent=1 // pred_region
      %s16 = ssub.s32 64, 64
      %17 = vsyncadd [#allocation3], %s16
      %s19 = sshll.u32 [#allocation2], 4
      %s20 = int_to_ptr.vmem [resolvable:$true] %s19
      %22 = dma.hbm_to_vmem [thread:$0]  %s0, 64, %s20, [#allocation3]
    $region5: #{tpu_custom_call.1} parent=1 // pred_fallthru
      _
    // Predicated region
    $region6: #{tpu_custom_call.1} parent=1 // pred_check
      _
    $region7: #{tpu_custom_call.1} parent=1 // pred_check_branch
      %24 = sbr.rel (0) target = $region9
    $region8: #{tpu_custom_call.1} parent=1 // pred_region
      %s26 = ssub.s32 64, 64
      %27 = vsyncadd [#allocation6], %s26
      %s29 = sshll.u32 [#allocation5], 4
      %s30 = int_to_ptr.vmem [resolvable:$true] %s29
      %32 = dma.hbm_to_vmem [thread:$0]  %s1, 64, %s30, [#allocation6]
    $region9: #{tpu_custom_call.1} parent=1 // pred_fallthru
      _
    // Predicated region
    $region10: #{tpu_custom_call.1} parent=1 // pred_check
      _
    $region11: #{tpu_custom_call.1} parent=1 // pred_check_branch
      %34 = sbr.rel (0) target = $region13
    $region12: #{tpu_custom_call.1} parent=1 // pred_region
      %s36 = ssub.s32 4096, 4096
      %37 = vsyncadd [#allocation6], %s36
      %s38 = sshll.u32 [#allocation7], 4
      %s39 = int_to_ptr.vmem [resolvable:$true] %s38
      %44 = dma.hbm_to_vmem [thread:$0]  %s2, 4096, %s39, [#allocation6], 1024, 1024, 64
    $region13: #{tpu_custom_call.1} parent=1 // pred_fallthru
      _
    // Predicated region
    $region14: #{tpu_custom_call.1} parent=1 // pred_check
      _
    $region15: #{tpu_custom_call.1} parent=1 // pred_check_branch
      %46 = sbr.rel (0) target = $region17
    $region16: #{tpu_custom_call.1} parent=1 // pred_region
      %s48 = ssub.s32 256, 256
      %49 = vsyncadd [#allocation9], %s48
      %s51 = sshll.u32 [#allocation8], 4
      %s52 = int_to_ptr.vmem [resolvable:$true] %s51
      %54 = dma.hbm_to_vmem [thread:$0]  %s3, 256, %s52, [#allocation9]
    $region17: #{tpu_custom_call.1} parent=1 // pred_fallthru
      _
    // Predicated region
    $region18: #{tpu_custom_call.1} parent=1 // pred_check
      _
    $region19: #{tpu_custom_call.1} parent=1 // pred_check_branch
      %56 = sbr.rel (0) target = $region21
    $region20: #{tpu_custom_call.1} parent=1 // pred_region
      %57 = dma.done [#allocation3], 64
    $region21: #{tpu_custom_call.1} parent=1 // pred_fallthru
      _
    // Predicated region
    $region22: #{tpu_custom_call.1} parent=1 // pred_check
      _
    $region23: #{tpu_custom_call.1} parent=1 // pred_check_branch
      %59 = sbr.rel (0) target = $region25
    $region24: #{tpu_custom_call.1} parent=1 // pred_region
      %60 = dma.done [#allocation6], 64
    $region25: #{tpu_custom_call.1} parent=1 // pred_fallthru
      _
    // Predicated region
    $region26: #{tpu_custom_call.1} parent=1 // pred_check
      _
    $region27: #{tpu_custom_call.1} parent=1 // pred_check_branch
      %62 = sbr.rel (0) target = $region29
    $region28: #{tpu_custom_call.1} parent=1 // pred_region
      %63 = dma.done [#allocation6], 4096
    $region29: #{tpu_custom_call.1} parent=1 // pred_fallthru
      _
    // Predicated region
    $region30: #{tpu_custom_call.1} parent=1 // pred_check
      _
    $region31: #{tpu_custom_call.1} parent=1 // pred_check_branch
      %65 = sbr.rel (0) target = $region33
    $region32: #{tpu_custom_call.1} parent=1 // pred_region
      %66 = dma.done [#allocation9], 256
    $region33: #{tpu_custom_call.1} parent=1 // pred_fallthru
      _
    %v68 = vld [vmem:[#allocation2] sm:$0xf]
    %v69 = vld [vmem:[#allocation5] sm:$0xf]
    %v70 = vmul.f32 %v69, 0.1
    %v71 = vadd.f32 %v68, %v70
    %v72 = vpack.c.bf16 %v71, %v71
    %v73 = vld [vmem:[#allocation7] sm:$0xff]
    %v74 = vld [vmem:[#allocation7 + $0x8] sm:$0xff]
    %v75 = vld [vmem:[#allocation7 + $0x10] sm:$0xff]
    %v76 = vld [vmem:[#allocation7 + $0x18] sm:$0xff]
    %v77 = vld [vmem:[#allocation7 + $0x20] sm:$0xff]
    %v78 = vld [vmem:[#allocation7 + $0x28] sm:$0xff]
    %v79 = vld [vmem:[#allocation7 + $0x30] sm:$0xff]
    %v80 = vld [vmem:[#allocation7 + $0x38] sm:$0xff]
    %v81 = vld [vmem:[#allocation7 + $0x40] sm:$0xff]
    %v82 = vld [vmem:[#allocation7 + $0x48] sm:$0xff]
    %v83 = vld [vmem:[#allocation7 + $0x50] sm:$0xff]
    %v84 = vld [vmem:[#allocation7 + $0x58] sm:$0xff]
    %v85 = vld [vmem:[#allocation7 + $0x60] sm:$0xff]
    %v86 = vld [vmem:[#allocation7 + $0x68] sm:$0xff]
    %v87 = vld [vmem:[#allocation7 + $0x70] sm:$0xff]
    %v88 = vld [vmem:[#allocation7 + $0x78] sm:$0xff]
    %v89 = vld [vmem:[#allocation7 + $0x80] sm:$0xff]
    %v90 = vld [vmem:[#allocation7 + $0x88] sm:$0xff]
    %v91 = vld [vmem:[#allocation7 + $0x90] sm:$0xff]
    %v92 = vld [vmem:[#allocation7 + $0x98] sm:$0xff]
    %v93 = vld [vmem:[#allocation7 + $0xa0] sm:$0xff]
    %v94 = vld [vmem:[#allocation7 + $0xa8] sm:$0xff]
    %v95 = vld [vmem:[#allocation7 + $0xb0] sm:$0xff]
    %v96 = vld [vmem:[#allocation7 + $0xb8] sm:$0xff]
    %v97 = vld [vmem:[#allocation7 + $0xc0] sm:$0xff]
    %v98 = vld [vmem:[#allocation7 + $0xc8] sm:$0xff]
    %v99 = vld [vmem:[#allocation7 + $0xd0] sm:$0xff]
    %v100 = vld [vmem:[#allocation7 + $0xd8] sm:$0xff]
    %v101 = vld [vmem:[#allocation7 + $0xe0] sm:$0xff]
    %v102 = vld [vmem:[#allocation7 + $0xe8] sm:$0xff]
    %v103 = vld [vmem:[#allocation7 + $0xf0] sm:$0xff]
    %v104 = vld [vmem:[#allocation7 + $0xf8] sm:$0xff]
    %v105 = vld [vmem:[#allocation8] sm:$0xff]
    %v106 = vld [vmem:[#allocation8 + $0x8] sm:$0xff]
    %v109 = vlaneseq
    %v110 = vshrl.u32 %v109, 7
    %v111 = vsub.s32 0, %v110
    %v112 = vrot.slane %v105, %v111
    %v113 = vlaneseq
    %v114 = vshrl.u32 %v113, 7
    %v115 = vsub.s32 1, %v114
    %v116 = vrot.slane %v105, %v115
    %v117 = vlaneseq
    %v118 = vshrl.u32 %v117, 7
    %v119 = vsub.s32 2, %v118
    %v120 = vrot.slane %v105, %v119
    %v121 = vlaneseq
    %v122 = vshrl.u32 %v121, 7
    %v123 = vsub.s32 3, %v122
    %v124 = vrot.slane %v105, %v123
    %v125 = vlaneseq
    %v126 = vshrl.u32 %v125, 7
    %v127 = vsub.s32 4, %v126
    %v128 = vrot.slane %v105, %v127
    %v129 = vlaneseq
    %v130 = vshrl.u32 %v129, 7
    %v131 = vsub.s32 5, %v130
    %v132 = vrot.slane %v105, %v131
    %v133 = vlaneseq
    %v134 = vshrl.u32 %v133, 7
    %v135 = vsub.s32 6, %v134
    %v136 = vrot.slane %v105, %v135
    %v137 = vlaneseq
    %v138 = vshrl.u32 %v137, 7
    %v139 = vsub.s32 7, %v138
    %v140 = vrot.slane %v105, %v139
    %v141 = vlaneseq
    %v142 = vshrl.u32 %v141, 7
    %v143 = vsub.s32 0, %v142
    %v144 = vrot.slane %v106, %v143
    %v145 = vlaneseq
    %v146 = vshrl.u32 %v145, 7
    %v147 = vsub.s32 1, %v146
    %v148 = vrot.slane %v106, %v147
    %v149 = vlaneseq
    %v150 = vshrl.u32 %v149, 7
    %v151 = vsub.s32 2, %v150
    %v152 = vrot.slane %v106, %v151
    %v153 = vlaneseq
    %v154 = vshrl.u32 %v153, 7
    %v155 = vsub.s32 3, %v154
    %v156 = vrot.slane %v106, %v155
    %v157 = vlaneseq
    %v158 = vshrl.u32 %v157, 7
    %v159 = vsub.s32 4, %v158
    %v160 = vrot.slane %v106, %v159
    %v161 = vlaneseq
    %v162 = vshrl.u32 %v161, 7
    %v163 = vsub.s32 5, %v162
    %v164 = vrot.slane %v106, %v163
    %v165 = vlaneseq
    %v166 = vshrl.u32 %v165, 7
    %v167 = vsub.s32 6, %v166
    %v168 = vrot.slane %v106, %v167
    %v169 = vlaneseq
    %v170 = vshrl.u32 %v169, 7
    %v171 = vsub.s32 7, %v170
    %v172 = vrot.slane %v106, %v171
    %v221 = vunpack.c.l.b16 %v73
    %v222 = vunpack.c.h.b16 %v73
    %v223 = vunpack.c.l.b16 %v74
    %v224 = vunpack.c.h.b16 %v74
    %v225 = vunpack.c.l.b16 %v75
    %v226 = vunpack.c.h.b16 %v75
    %v227 = vunpack.c.l.b16 %v76
    %v228 = vunpack.c.h.b16 %v76
    %v229 = vunpack.c.l.b16 %v77
    %v230 = vunpack.c.h.b16 %v77
    %v231 = vunpack.c.l.b16 %v78
    %v232 = vunpack.c.h.b16 %v78
    %v233 = vunpack.c.l.b16 %v79
    %v234 = vunpack.c.h.b16 %v79
    %v235 = vunpack.c.l.b16 %v80
    %v236 = vunpack.c.h.b16 %v80
    %v237 = vunpack.c.l.b16 %v81
    %v238 = vunpack.c.h.b16 %v81
    %v239 = vunpack.c.l.b16 %v82
    %v240 = vunpack.c.h.b16 %v82
    %v241 = vunpack.c.l.b16 %v83
    %v242 = vunpack.c.h.b16 %v83
    %v243 = vunpack.c.l.b16 %v84
    %v244 = vunpack.c.h.b16 %v84
    %v245 = vunpack.c.l.b16 %v85
    %v246 = vunpack.c.h.b16 %v85
    %v247 = vunpack.c.l.b16 %v86
    %v248 = vunpack.c.h.b16 %v86
    %v249 = vunpack.c.l.b16 %v87
    %v250 = vunpack.c.h.b16 %v87
    %v251 = vunpack.c.l.b16 %v88
    %v252 = vunpack.c.h.b16 %v88
    %v253 = vunpack.c.l.b16 %v89
    %v254 = vunpack.c.h.b16 %v89
    %v255 = vunpack.c.l.b16 %v90
    %v256 = vunpack.c.h.b16 %v90
    %v257 = vunpack.c.l.b16 %v91
    %v258 = vunpack.c.h.b16 %v91
    %v259 = vunpack.c.l.b16 %v92
    %v260 = vunpack.c.h.b16 %v92
    %v261 = vunpack.c.l.b16 %v93
    %v262 = vunpack.c.h.b16 %v93
    %v263 = vunpack.c.l.b16 %v94
    %v264 = vunpack.c.h.b16 %v94
    %v265 = vunpack.c.l.b16 %v95
    %v266 = vunpack.c.h.b16 %v95
    %v267 = vunpack.c.l.b16 %v96
    %v268 = vunpack.c.h.b16 %v96
    %v269 = vunpack.c.l.b16 %v97
    %v270 = vunpack.c.h.b16 %v97
    %v271 = vunpack.c.l.b16 %v98
    %v272 = vunpack.c.h.b16 %v98
    %v273 = vunpack.c.l.b16 %v99
    %v274 = vunpack.c.h.b16 %v99
    %v275 = vunpack.c.l.b16 %v100
    %v276 = vunpack.c.h.b16 %v100
    %v277 = vunpack.c.l.b16 %v101
    %v278 = vunpack.c.h.b16 %v101
    %v279 = vunpack.c.l.b16 %v102
    %v280 = vunpack.c.h.b16 %v102
    %v281 = vunpack.c.l.b16 %v103
    %v282 = vunpack.c.h.b16 %v103
    %v283 = vunpack.c.l.b16 %v104
    %v284 = vunpack.c.h.b16 %v104
    %v285 = vpack.c.b16 %v237, %v221
    %v286 = vpack.c.b16 %v238, %v222
    %v287 = vpack.c.b16 %v239, %v223
    %v288 = vpack.c.b16 %v240, %v224
    %v289 = vpack.c.b16 %v241, %v225
    %v290 = vpack.c.b16 %v242, %v226
    %v291 = vpack.c.b16 %v243, %v227
    %v292 = vpack.c.b16 %v244, %v228
    %v293 = vpack.c.b16 %v245, %v229
    %v294 = vpack.c.b16 %v246, %v230
    %v295 = vpack.c.b16 %v247, %v231
    %v296 = vpack.c.b16 %v248, %v232
    %v297 = vpack.c.b16 %v249, %v233
    %v298 = vpack.c.b16 %v250, %v234
    %v299 = vpack.c.b16 %v251, %v235
    %v300 = vpack.c.b16 %v252, %v236
    %v301 = vpack.c.b16 %v269, %v253
    %v302 = vpack.c.b16 %v270, %v254
    %v303 = vpack.c.b16 %v271, %v255
    %v304 = vpack.c.b16 %v272, %v256
    %v305 = vpack.c.b16 %v273, %v257
    %v306 = vpack.c.b16 %v274, %v258
    %v307 = vpack.c.b16 %v275, %v259
    %v308 = vpack.c.b16 %v276, %v260
    %v309 = vpack.c.b16 %v277, %v261
    %v310 = vpack.c.b16 %v278, %v262
    %v311 = vpack.c.b16 %v279, %v263
    %v312 = vpack.c.b16 %v280, %v264
    %v313 = vpack.c.b16 %v281, %v265
    %v314 = vpack.c.b16 %v282, %v266
    %v315 = vpack.c.b16 %v283, %v267
    %v316 = vpack.c.b16 %v284, %v268
    %vm349 = vcmask 261120
    %v351 = vsel %vm349, %v72, 0
    %353 = vmatprep.subr.bf16.mxu0 %v286
    %354 = vmatpush1.bf16.msra.mxu0 %v285
    %355 = vmatprep.subr.bf16.mxu0 %v302
    %356 = vmatpush1.bf16.msra.mxu0 %v301
    %357 = vmatprep.subr.bf16.mxu0 0
    %358 = vmatpush1.bf16.msra.mxu0 0
    %359 = vmatprep.subr.bf16.mxu0 0
    %360 = vmatpush1.bf16.msra.mxu0 0
    %361 = vmatprep.subr.bf16.mxu0 0
    %362 = vmatpush1.bf16.msra.mxu0 0
    %363 = vmatprep.subr.bf16.mxu0 0
    %364 = vmatpush1.bf16.msra.mxu0 0
    %365 = vmatprep.subr.bf16.mxu0 0
    %366 = vmatpush1.bf16.msra.mxu0 0
    %367 = vmatprep.subr.bf16.mxu0 0
    %368 = vmatpush1.bf16.msra.mxu0 0
    %369 = vmatprep.subr.bf16.mxu0 0
    %370 = vmatpush1.bf16.msra.mxu0 0
    %371 = vmatprep.subr.bf16.mxu0 0
    %372 = vmatpush1.bf16.msra.mxu0 0
    %373 = vmatprep.subr.bf16.mxu0 0
    %374 = vmatpush1.bf16.msra.mxu0 0
    %375 = vmatprep.subr.bf16.mxu0 0
    %376 = vmatpush1.bf16.msra.mxu0 0
    %377 = vmatprep.subr.bf16.mxu0 0
    %378 = vmatpush1.bf16.msra.mxu0 0
    %379 = vmatprep.subr.bf16.mxu0 0
    %380 = vmatpush1.bf16.msra.mxu0 0
    %381 = vmatprep.subr.bf16.mxu0 0
    %382 = vmatpush1.bf16.msra.mxu0 0
    %383 = vmatprep.subr.bf16.mxu0 0
    %384 = vmatpush1.bf16.msra.mxu0 0
    %385 = vmatprep.mubr.bf16.mxu0 0
    %386 = vmatmul.mubr.bf16.gmra.mrb[0].mxu0 %v351
    %v387 = vpop.f32.mrb[0].mxu0
    %v388 = vadd.f32 %v112, %v387
    %v389 = vpop.f32.mrb[0].mxu0
    %v390 = vadd.f32 %v116, %v389
    %v391 = vpop.f32.mrb[0].mxu0
    %v392 = vpop.f32.mrb[0].mxu0
    %393 = vdwg.mxu0
    %394 = vmatprep.subr.bf16.mxu0 %v288
    %395 = vmatpush1.bf16.msra.mxu0 %v287
    %396 = vmatprep.subr.bf16.mxu0 %v304
    %397 = vmatpush1.bf16.msra.mxu0 %v303
    %398 = vmatprep.subr.bf16.mxu0 0
    %399 = vmatpush1.bf16.msra.mxu0 0
    %400 = vmatprep.subr.bf16.mxu0 0
    %401 = vmatpush1.bf16.msra.mxu0 0
    %402 = vmatprep.subr.bf16.mxu0 0
    %403 = vmatpush1.bf16.msra.mxu0 0
    %404 = vmatprep.subr.bf16.mxu0 0
    %405 = vmatpush1.bf16.msra.mxu0 0
    %406 = vmatprep.subr.bf16.mxu0 0
    %407 = vmatpush1.bf16.msra.mxu0 0
    %408 = vmatprep.subr.bf16.mxu0 0
    %409 = vmatpush1.bf16.msra.mxu0 0
    %410 = vmatprep.subr.bf16.mxu0 0
    %411 = vmatpush1.bf16.msra.mxu0 0
    %412 = vmatprep.subr.bf16.mxu0 0
    %413 = vmatpush1.bf16.msra.mxu0 0
    %414 = vmatprep.subr.bf16.mxu0 0
    %415 = vmatpush1.bf16.msra.mxu0 0
    %416 = vmatprep.subr.bf16.mxu0 0
    %417 = vmatpush1.bf16.msra.mxu0 0
    %418 = vmatprep.subr.bf16.mxu0 0
    %419 = vmatpush1.bf16.msra.mxu0 0
    %420 = vmatprep.subr.bf16.mxu0 0
    %421 = vmatpush1.bf16.msra.mxu0 0
    %422 = vmatprep.subr.bf16.mxu0 0
    %423 = vmatpush1.bf16.msra.mxu0 0
    %424 = vmatprep.subr.bf16.mxu0 0
    %425 = vmatpush1.bf16.msra.mxu0 0
    %426 = vmatprep.mubr.bf16.mxu0 0
    %427 = vmatmul.mubr.bf16.gmra.mrb[0].mxu0 %v351
    %v428 = vpop.f32.mrb[0].mxu0
    %v429 = vadd.f32 %v120, %v428
    %v430 = vpop.f32.mrb[0].mxu0
    %v431 = vadd.f32 %v124, %v430
    %v432 = vpop.f32.mrb[0].mxu0
    %v433 = vpop.f32.mrb[0].mxu0
    %434 = vdwg.mxu0
    %435 = vmatprep.subr.bf16.mxu0 %v290
    %436 = vmatpush1.bf16.msra.mxu0 %v289
    %437 = vmatprep.subr.bf16.mxu0 %v306
    %438 = vmatpush1.bf16.msra.mxu0 %v305
    %439 = vmatprep.subr.bf16.mxu0 0
    %440 = vmatpush1.bf16.msra.mxu0 0
    %441 = vmatprep.subr.bf16.mxu0 0
    %442 = vmatpush1.bf16.msra.mxu0 0
    %443 = vmatprep.subr.bf16.mxu0 0
    %444 = vmatpush1.bf16.msra.mxu0 0
    %445 = vmatprep.subr.bf16.mxu0 0
    %446 = vmatpush1.bf16.msra.mxu0 0
    %447 = vmatprep.subr.bf16.mxu0 0
    %448 = vmatpush1.bf16.msra.mxu0 0
    %449 = vmatprep.subr.bf16.mxu0 0
    %450 = vmatpush1.bf16.msra.mxu0 0
    %451 = vmatprep.subr.bf16.mxu0 0
    %452 = vmatpush1.bf16.msra.mxu0 0
    %453 = vmatprep.subr.bf16.mxu0 0
    %454 = vmatpush1.bf16.msra.mxu0 0
    %455 = vmatprep.subr.bf16.mxu0 0
    %456 = vmatpush1.bf16.msra.mxu0 0
    %457 = vmatprep.subr.bf16.mxu0 0
    %458 = vmatpush1.bf16.msra.mxu0 0
    %459 = vmatprep.subr.bf16.mxu0 0
    %460 = vmatpush1.bf16.msra.mxu0 0
    %461 = vmatprep.subr.bf16.mxu0 0
    %462 = vmatpush1.bf16.msra.mxu0 0
    %463 = vmatprep.subr.bf16.mxu0 0
    %464 = vmatpush1.bf16.msra.mxu0 0
    %465 = vmatprep.subr.bf16.mxu0 0
    %466 = vmatpush1.bf16.msra.mxu0 0
    %467 = vmatprep.mubr.bf16.mxu0 0
    %468 = vmatmul.mubr.bf16.gmra.mrb[0].mxu0 %v351
    %v469 = vpop.f32.mrb[0].mxu0
    %v470 = vadd.f32 %v128, %v469
    %v471 = vpop.f32.mrb[0].mxu0
    %v472 = vadd.f32 %v132, %v471
    %v473 = vpop.f32.mrb[0].mxu0
    %v474 = vpop.f32.mrb[0].mxu0
    %475 = vdwg.mxu0
    %476 = vmatprep.subr.bf16.mxu0 %v292
    %477 = vmatpush1.bf16.msra.mxu0 %v291
    %478 = vmatprep.subr.bf16.mxu0 %v308
    %479 = vmatpush1.bf16.msra.mxu0 %v307
    %480 = vmatprep.subr.bf16.mxu0 0
    %481 = vmatpush1.bf16.msra.mxu0 0
    %482 = vmatprep.subr.bf16.mxu0 0
    %483 = vmatpush1.bf16.msra.mxu0 0
    %484 = vmatprep.subr.bf16.mxu0 0
    %485 = vmatpush1.bf16.msra.mxu0 0
    %486 = vmatprep.subr.bf16.mxu0 0
    %487 = vmatpush1.bf16.msra.mxu0 0
    %488 = vmatprep.subr.bf16.mxu0 0
    %489 = vmatpush1.bf16.msra.mxu0 0
    %490 = vmatprep.subr.bf16.mxu0 0
    %491 = vmatpush1.bf16.msra.mxu0 0
    %492 = vmatprep.subr.bf16.mxu0 0
    %493 = vmatpush1.bf16.msra.mxu0 0
    %494 = vmatprep.subr.bf16.mxu0 0
    %495 = vmatpush1.bf16.msra.mxu0 0
    %496 = vmatprep.subr.bf16.mxu0 0
    %497 = vmatpush1.bf16.msra.mxu0 0
    %498 = vmatprep.subr.bf16.mxu0 0
    %499 = vmatpush1.bf16.msra.mxu0 0
    %500 = vmatprep.subr.bf16.mxu0 0
    %501 = vmatpush1.bf16.msra.mxu0 0
    %502 = vmatprep.subr.bf16.mxu0 0
    %503 = vmatpush1.bf16.msra.mxu0 0
    %504 = vmatprep.subr.bf16.mxu0 0
    %505 = vmatpush1.bf16.msra.mxu0 0
    %506 = vmatprep.subr.bf16.mxu0 0
    %507 = vmatpush1.bf16.msra.mxu0 0
    %508 = vmatprep.mubr.bf16.mxu0 0
    %509 = vmatmul.mubr.bf16.gmra.mrb[0].mxu0 %v351
    %v510 = vpop.f32.mrb[0].mxu0
    %v511 = vadd.f32 %v136, %v510
    %v512 = vpop.f32.mrb[0].mxu0
    %v513 = vadd.f32 %v140, %v512
    %v514 = vpop.f32.mrb[0].mxu0
    %v515 = vpop.f32.mrb[0].mxu0
    %516 = vdwg.mxu0
    %517 = vmatprep.subr.bf16.mxu0 %v294
    %518 = vmatpush1.bf16.msra.mxu0 %v293
    %519 = vmatprep.subr.bf16.mxu0 %v310
    %520 = vmatpush1.bf16.msra.mxu0 %v309
    %521 = vmatprep.subr.bf16.mxu0 0
    %522 = vmatpush1.bf16.msra.mxu0 0
    %523 = vmatprep.subr.bf16.mxu0 0
    %524 = vmatpush1.bf16.msra.mxu0 0
    %525 = vmatprep.subr.bf16.mxu0 0
    %526 = vmatpush1.bf16.msra.mxu0 0
    %527 = vmatprep.subr.bf16.mxu0 0
    %528 = vmatpush1.bf16.msra.mxu0 0
    %529 = vmatprep.subr.bf16.mxu0 0
    %530 = vmatpush1.bf16.msra.mxu0 0
    %531 = vmatprep.subr.bf16.mxu0 0
    %532 = vmatpush1.bf16.msra.mxu0 0
    %533 = vmatprep.subr.bf16.mxu0 0
    %534 = vmatpush1.bf16.msra.mxu0 0
    %535 = vmatprep.subr.bf16.mxu0 0
    %536 = vmatpush1.bf16.msra.mxu0 0
    %537 = vmatprep.subr.bf16.mxu0 0
    %538 = vmatpush1.bf16.msra.mxu0 0
    %539 = vmatprep.subr.bf16.mxu0 0
    %540 = vmatpush1.bf16.msra.mxu0 0
    %541 = vmatprep.subr.bf16.mxu0 0
    %542 = vmatpush1.bf16.msra.mxu0 0
    %543 = vmatprep.subr.bf16.mxu0 0
    %544 = vmatpush1.bf16.msra.mxu0 0
    %545 = vmatprep.subr.bf16.mxu0 0
    %546 = vmatpush1.bf16.msra.mxu0 0
    %547 = vmatprep.subr.bf16.mxu0 0
    %548 = vmatpush1.bf16.msra.mxu0 0
    %549 = vmatprep.mubr.bf16.mxu0 0
    %550 = vmatmul.mubr.bf16.gmra.mrb[0].mxu0 %v351
    %v551 = vpop.f32.mrb[0].mxu0
    %v552 = vadd.f32 %v144, %v551
    %v553 = vpop.f32.mrb[0].mxu0
    %v554 = vadd.f32 %v148, %v553
    %v555 = vpop.f32.mrb[0].mxu0
    %v556 = vpop.f32.mrb[0].mxu0
    %557 = vdwg.mxu0
    %558 = vmatprep.subr.bf16.mxu0 %v296
    %559 = vmatpush1.bf16.msra.mxu0 %v295
    %560 = vmatprep.subr.bf16.mxu0 %v312
    %561 = vmatpush1.bf16.msra.mxu0 %v311
    %562 = vmatprep.subr.bf16.mxu0 0
    %563 = vmatpush1.bf16.msra.mxu0 0
    %564 = vmatprep.subr.bf16.mxu0 0
    %565 = vmatpush1.bf16.msra.mxu0 0
    %566 = vmatprep.subr.bf16.mxu0 0
    %567 = vmatpush1.bf16.msra.mxu0 0
    %568 = vmatprep.subr.bf16.mxu0 0
    %569 = vmatpush1.bf16.msra.mxu0 0
    %570 = vmatprep.subr.bf16.mxu0 0
    %571 = vmatpush1.bf16.msra.mxu0 0
    %572 = vmatprep.subr.bf16.mxu0 0
    %573 = vmatpush1.bf16.msra.mxu0 0
    %574 = vmatprep.subr.bf16.mxu0 0
    %575 = vmatpush1.bf16.msra.mxu0 0
    %576 = vmatprep.subr.bf16.mxu0 0
    %577 = vmatpush1.bf16.msra.mxu0 0
    %578 = vmatprep.subr.bf16.mxu0 0
    %579 = vmatpush1.bf16.msra.mxu0 0
    %580 = vmatprep.subr.bf16.mxu0 0
    %581 = vmatpush1.bf16.msra.mxu0 0
    %582 = vmatprep.subr.bf16.mxu0 0
    %583 = vmatpush1.bf16.msra.mxu0 0
    %584 = vmatprep.subr.bf16.mxu0 0
    %585 = vmatpush1.bf16.msra.mxu0 0
    %586 = vmatprep.subr.bf16.mxu0 0
    %587 = vmatpush1.bf16.msra.mxu0 0
    %588 = vmatprep.subr.bf16.mxu0 0
    %589 = vmatpush1.bf16.msra.mxu0 0
    %590 = vmatprep.mubr.bf16.mxu0 0
    %591 = vmatmul.mubr.bf16.gmra.mrb[0].mxu0 %v351
    %v592 = vpop.f32.mrb[0].mxu0
    %v593 = vadd.f32 %v152, %v592
    %v594 = vpop.f32.mrb[0].mxu0
    %v595 = vadd.f32 %v156, %v594
    %v596 = vpop.f32.mrb[0].mxu0
    %v597 = vpop.f32.mrb[0].mxu0
    %598 = vdwg.mxu0
    %599 = vmatprep.subr.bf16.mxu0 %v298
    %600 = vmatpush1.bf16.msra.mxu0 %v297
    %601 = vmatprep.subr.bf16.mxu0 %v314
    %602 = vmatpush1.bf16.msra.mxu0 %v313
    %603 = vmatprep.subr.bf16.mxu0 0
    %604 = vmatpush1.bf16.msra.mxu0 0
    %605 = vmatprep.subr.bf16.mxu0 0
    %606 = vmatpush1.bf16.msra.mxu0 0
    %607 = vmatprep.subr.bf16.mxu0 0
    %608 = vmatpush1.bf16.msra.mxu0 0
    %609 = vmatprep.subr.bf16.mxu0 0
    %610 = vmatpush1.bf16.msra.mxu0 0
    %611 = vmatprep.subr.bf16.mxu0 0
    %612 = vmatpush1.bf16.msra.mxu0 0
    %613 = vmatprep.subr.bf16.mxu0 0
    %614 = vmatpush1.bf16.msra.mxu0 0
    %615 = vmatprep.subr.bf16.mxu0 0
    %616 = vmatpush1.bf16.msra.mxu0 0
    %617 = vmatprep.subr.bf16.mxu0 0
    %618 = vmatpush1.bf16.msra.mxu0 0
    %619 = vmatprep.subr.bf16.mxu0 0
    %620 = vmatpush1.bf16.msra.mxu0 0
    %621 = vmatprep.subr.bf16.mxu0 0
    %622 = vmatpush1.bf16.msra.mxu0 0
    %623 = vmatprep.subr.bf16.mxu0 0
    %624 = vmatpush1.bf16.msra.mxu0 0
    %625 = vmatprep.subr.bf16.mxu0 0
    %626 = vmatpush1.bf16.msra.mxu0 0
    %627 = vmatprep.subr.bf16.mxu0 0
    %628 = vmatpush1.bf16.msra.mxu0 0
    %629 = vmatprep.subr.bf16.mxu0 0
    %630 = vmatpush1.bf16.msra.mxu0 0
    %631 = vmatprep.mubr.bf16.mxu0 0
    %632 = vmatmul.mubr.bf16.gmra.mrb[0].mxu0 %v351
    %v633 = vpop.f32.mrb[0].mxu0
    %v634 = vadd.f32 %v160, %v633
    %v635 = vpop.f32.mrb[0].mxu0
    %v636 = vadd.f32 %v164, %v635
    %v637 = vpop.f32.mrb[0].mxu0
    %v638 = vpop.f32.mrb[0].mxu0
    %639 = vdwg.mxu0
    %640 = vmatprep.subr.bf16.mxu0 %v300
    %641 = vmatpush1.bf16.msra.mxu0 %v299
    %642 = vmatprep.subr.bf16.mxu0 %v316
    %643 = vmatpush1.bf16.msra.mxu0 %v315
    %644 = vmatprep.subr.bf16.mxu0 0
    %645 = vmatpush1.bf16.msra.mxu0 0
    %646 = vmatprep.subr.bf16.mxu0 0
    %647 = vmatpush1.bf16.msra.mxu0 0
    %648 = vmatprep.subr.bf16.mxu0 0
    %649 = vmatpush1.bf16.msra.mxu0 0
    %650 = vmatprep.subr.bf16.mxu0 0
    %651 = vmatpush1.bf16.msra.mxu0 0
    %652 = vmatprep.subr.bf16.mxu0 0
    %653 = vmatpush1.bf16.msra.mxu0 0
    %654 = vmatprep.subr.bf16.mxu0 0
    %655 = vmatpush1.bf16.msra.mxu0 0
    %656 = vmatprep.subr.bf16.mxu0 0
    %657 = vmatpush1.bf16.msra.mxu0 0
    %658 = vmatprep.subr.bf16.mxu0 0
    %659 = vmatpush1.bf16.msra.mxu0 0
    %660 = vmatprep.subr.bf16.mxu0 0
    %661 = vmatpush1.bf16.msra.mxu0 0
    %662 = vmatprep.subr.bf16.mxu0 0
    %663 = vmatpush1.bf16.msra.mxu0 0
    %664 = vmatprep.subr.bf16.mxu0 0
    %665 = vmatpush1.bf16.msra.mxu0 0
    %666 = vmatprep.subr.bf16.mxu0 0
    %667 = vmatpush1.bf16.msra.mxu0 0
    %668 = vmatprep.subr.bf16.mxu0 0
    %669 = vmatpush1.bf16.msra.mxu0 0
    %670 = vmatprep.subr.bf16.mxu0 0
    %671 = vmatpush1.bf16.msra.mxu0 0
    %672 = vmatprep.mubr.bf16.mxu0 0
    %673 = vmatmul.mubr.bf16.gmra.mrb[0].mxu0 %v351
    %v674 = vpop.f32.mrb[0].mxu0
    %v675 = vadd.f32 %v168, %v674
    %v676 = vpop.f32.mrb[0].mxu0
    %v677 = vadd.f32 %v172, %v676
    %v678 = vpop.f32.mrb[0].mxu0
    %v679 = vpop.f32.mrb[0].mxu0
    %680 = vdwg.mxu0
    %v697 = vcombine.low %v388, %v390
    %v698 = vcombine.low %v429, %v431
    %v699 = vcombine.low %v470, %v472
    %v700 = vcombine.low %v511, %v513
    %v701 = vcombine.low %v552, %v554
    %v702 = vcombine.low %v593, %v595
    %v703 = vcombine.low %v634, %v636
    %v704 = vcombine.low %v675, %v677
    %713 = vst [vmem:[#allocation10] sm:$0xff] %v697
    %714 = vst [vmem:[#allocation10 + $0x8] sm:$0xff] %v698
    %715 = vst [vmem:[#allocation10 + $0x10] sm:$0xff] %v699
    %716 = vst [vmem:[#allocation10 + $0x18] sm:$0xff] %v700
    %717 = vst [vmem:[#allocation10 + $0x20] sm:$0xff] %v701
    %718 = vst [vmem:[#allocation10 + $0x28] sm:$0xff] %v702
    %719 = vst [vmem:[#allocation10 + $0x30] sm:$0xff] %v703
    %720 = vst [vmem:[#allocation10 + $0x38] sm:$0xff] %v704
    // Predicated region
    $region34: #{tpu_custom_call.1} parent=1 // pred_check
      _
    $region35: #{tpu_custom_call.1} parent=1 // pred_check_branch
      %722 = sbr.rel (0) target = $region37
    $region36: #{tpu_custom_call.1} parent=1 // pred_region
      %s724 = ssub.s32 1024, 1024
      %725 = vsyncadd [#allocation4], %s724
      %s727 = sshll.u32 [#allocation10], 4
      %s728 = int_to_ptr.vmem [resolvable:$true] %s727
      %730 = dma.vmem_to_hbm [thread:$0]  %s728, 1024, %s4, [#allocation4]
    $region37: #{tpu_custom_call.1} parent=1 // pred_fallthru
      _
    // Predicated region
    $region38: #{tpu_custom_call.1} parent=1 // pred_check
      _
    $region39: #{tpu_custom_call.1} parent=1 // pred_check_branch
      %732 = sbr.rel (0) target = $region41
    $region40: #{tpu_custom_call.1} parent=1 // pred_region
      %733 = dma.done [#allocation4], 1024
    $region41: #{tpu_custom_call.1} parent=1 // pred_fallthru
      _
    %734 = vsyncpa [#allocation3], 1
    %735 = vsyncpa [#allocation6], 1
    %736 = vsyncpa [#allocation9], 1
    %737 = vsyncpa [#allocation4], 1

</llo_original>
